<compile_context>
chip_gen: v7x
topology: tpu7x:2x2x1
jax: 0.10.0
libtpu: 0.0.40
codegen_flags: <defaults>
</compile_context>

<pallas_src>
import functools
import math

import jax
import jax.numpy as jnp
from jax.experimental import pallas as pl
from jax.experimental.pallas import tpu as pltpu

DEFAULT_TM = 1024                  # rows per grid step (multiple of 16)
DEFAULT_TV = 2048                  # vocab columns per grid step (mult. of 128)
_COMPUTE_DTYPE = jnp.bfloat16      # MXU operand dtype (accumulation is f32)
_VMEM_LIMIT = 48 * 1024 * 1024     # fits v5e/v6e (128 MiB) and v7x (64 MiB)


def _round_up(x, m):
    return ((x + m - 1) // m) * m


def _row_tiling(M, tm):
    """Row tile (multiple of 16) + grid size; prefer >= 2 grid steps."""
    tm = max(16, _round_up(int(tm), 16))
    tm = min(tm, _round_up(M, 16))                 # don't exceed the data
    if M > 16:                                     # >=2 steps -> both v7x cores
        tm = min(tm, _round_up(pl.cdiv(M, 2), 16))
    return tm, pl.cdiv(M, tm)


def _vocab_tiling(V_pad, tv):
    tv = max(128, _round_up(int(tv), 128))
    tv = min(tv, V_pad)
    return tv, pl.cdiv(V_pad, tv)


def _pad_vocab(wo, bo):
    """Zero-pad Wo / bo columns to a multiple of 128 (lane-dense stores)."""
    J, V = wo.shape
    V_pad = _round_up(V, 128)
    if V_pad != V:
        wo = jnp.pad(wo, ((0, 0), (0, V_pad - V)))
        bo = jnp.pad(bo.reshape(1, V), ((0, 0), (0, V_pad - V)))
    return wo, bo.reshape(1, V_pad), V_pad


# ------------------------------ kernels -------------------------------------

def _fused_joiner_kernel(enc_ref, dec_ref, we_ref, wd_ref, bj_ref,
                         wo_ref, bo_ref, out_ref, t_scr):
    # Grid (row tile i, vocab tile j).  tanh(enc@We + dec@Wd + b) is computed
    # once per row tile (j == 0) into a VMEM scratch, reused across j.
    @pl.when(pl.program_id(1) == 0)
    def _():
        h = jnp.dot(enc_ref[...].astype(_COMPUTE_DTYPE), we_ref[...],
                    preferred_element_type=jnp.float32)
        h = h + jnp.dot(dec_ref[...].astype(_COMPUTE_DTYPE), wd_ref[...],
                        preferred_element_type=jnp.float32)
        t_scr[...] = jnp.tanh(h + bj_ref[...]).astype(_COMPUTE_DTYPE)

    logit = jnp.dot(t_scr[...], wo_ref[...], preferred_element_type=jnp.float32)
    out_ref[...] = (logit + bo_ref[...]).astype(out_ref.dtype)


def _bcast_joiner_kernel(big_ref, small_ref, wb_ref, ws_ref, bj_ref,
                         wo_ref, bo_ref, out_ref, t_scr):
    # Grid (outer n, rep tile r, vocab tile j).  big_ref: (tr, Kb) rows of the
    # non-broadcast side; small_ref: the single (1, Ks) row shared by all of
    # them (same block reused across r and j via its index_map).  Both
    # projections are fused here -> no projected intermediate in HBM.
    @pl.when(pl.program_id(2) == 0)
    def _():
        h = jnp.dot(big_ref[...].astype(_COMPUTE_DTYPE), wb_ref[...],
                    preferred_element_type=jnp.float32)
        s = jnp.dot(small_ref[...].astype(_COMPUTE_DTYPE), ws_ref[...],
                    preferred_element_type=jnp.float32)          # (1, J)
        t_scr[...] = jnp.tanh(h + s + bj_ref[...]).astype(_COMPUTE_DTYPE)

    logit = jnp.dot(t_scr[...], wo_ref[...], preferred_element_type=jnp.float32)
    out_ref[...] = (logit + bo_ref[...]).astype(out_ref.dtype)


def _combine_kernel(a_ref, b_ref, wo_ref, bo_ref, out_ref, t_scr):
    # project_input=False: out = tanh(a + b) @ Wo + bo, vocab-tiled.
    @pl.when(pl.program_id(1) == 0)
    def _():
        t = jnp.tanh(a_ref[...].astype(jnp.float32)
                     + b_ref[...].astype(jnp.float32))
        t_scr[...] = t.astype(_COMPUTE_DTYPE)

    logit = jnp.dot(t_scr[...], wo_ref[...], preferred_element_type=jnp.float32)
    out_ref[...] = (logit + bo_ref[...]).astype(out_ref.dtype)


# -------------------------- jitted flat wrappers -----------------------------

@functools.partial(jax.jit, static_argnames=("tm", "tv", "out_dtype"))
def _joiner_fused_flat(enc2d, dec2d, we, wd, bj, wo, bo, *, tm, tv, out_dtype):
    """enc2d: (M, E), dec2d: (M, D) -> (M, V); rows independent."""
    M, E = enc2d.shape
    D = dec2d.shape[1]
    J = we.shape[1]
    V = wo.shape[1]
    tm_eff, grid_m = _row_tiling(M, tm)
    wo_p, bo_p, V_pad = _pad_vocab(wo, bo)
    tv_eff, grid_v = _vocab_tiling(V_pad, tv)

    we = we.astype(_COMPUTE_DTYPE)
    wd = wd.astype(_COMPUTE_DTYPE)
    wo_p = wo_p.astype(_COMPUTE_DTYPE)
    bj = bj.astype(jnp.float32).reshape(1, J)
    bo_p = bo_p.astype(jnp.float32)

    out = pl.pallas_call(
        _fused_joiner_kernel,
        out_shape=jax.ShapeDtypeStruct((M, V_pad), out_dtype),
        grid_spec=pltpu.PrefetchScalarGridSpec(
            num_scalar_prefetch=0,
            grid=(grid_m, grid_v),
            in_specs=[
                pl.BlockSpec((tm_eff, E), lambda i, j: (i, 0)),   # encoder rows
                pl.BlockSpec((tm_eff, D), lambda i, j: (i, 0)),   # decoder rows
                pl.BlockSpec((E, J), lambda i, j: (0, 0)),        # We (resident)
                pl.BlockSpec((D, J), lambda i, j: (0, 0)),        # Wd (resident)
                pl.BlockSpec((1, J), lambda i, j: (0, 0)),        # be + bd
                pl.BlockSpec((J, tv_eff), lambda i, j: (0, j)),   # Wo vocab tile
                pl.BlockSpec((1, tv_eff), lambda i, j: (0, j)),   # bo vocab tile
            ],
            out_specs=pl.BlockSpec((tm_eff, tv_eff), lambda i, j: (i, j)),
            scratch_shapes=[pltpu.VMEM((tm_eff, J), _COMPUTE_DTYPE)],
        ),
        compiler_params=pltpu.CompilerParams(
            dimension_semantics=("parallel", "arbitrary"),
            vmem_limit_bytes=_VMEM_LIMIT),
    )(enc2d, dec2d, we, wd, bj, wo_p, bo_p)
    return out if V_pad == V else out[:, :V]


@functools.partial(jax.jit, static_argnames=("tm", "tv", "out_dtype"))
def _joiner_bcast_flat(big3d, small3d, w_big, w_small, bj, wo, bo,
                       *, tm, tv, out_dtype):
    """big3d: (Ms, rep, Kb), small3d: (Ms, 1, Ks) -> (Ms, rep, V).

    Fully fused: both projections + tanh + output_linear; the small side is
    never broadcast in HBM (its single row is reused for every rep tile).
    """
    Ms, rep, Kb = big3d.shape
    Ks = small3d.shape[-1]
    J = w_big.shape[1]
    V = wo.shape[1]
    tr, grid_r = _row_tiling(rep, tm)
    wo_p, bo_p, V_pad = _pad_vocab(wo, bo)
    tv_eff, grid_v = _vocab_tiling(V_pad, tv)

    w_big = w_big.astype(_COMPUTE_DTYPE)
    w_small = w_small.astype(_COMPUTE_DTYPE)
    wo_p = wo_p.astype(_COMPUTE_DTYPE)
    bj = bj.astype(jnp.float32).reshape(1, J)
    bo_p = bo_p.astype(jnp.float32)

    out = pl.pallas_call(
        _bcast_joiner_kernel,
        out_shape=jax.ShapeDtypeStruct((Ms, rep, V_pad), out_dtype),
        grid_spec=pltpu.PrefetchScalarGridSpec(
            num_scalar_prefetch=0,
            grid=(Ms, grid_r, grid_v),
            in_specs=[
                pl.BlockSpec((None, tr, Kb), lambda n, r, j: (n, r, 0)),  # big
                pl.BlockSpec((None, 1, Ks), lambda n, r, j: (n, 0, 0)),   # small
                pl.BlockSpec((Kb, J), lambda n, r, j: (0, 0)),            # W_big
                pl.BlockSpec((Ks, J), lambda n, r, j: (0, 0)),            # W_small
                pl.BlockSpec((1, J), lambda n, r, j: (0, 0)),             # be + bd
                pl.BlockSpec((J, tv_eff), lambda n, r, j: (0, j)),        # Wo
                pl.BlockSpec((1, tv_eff), lambda n, r, j: (0, j)),        # bo
            ],
            out_specs=pl.BlockSpec((None, tr, tv_eff),
                                   lambda n, r, j: (n, r, j)),
            scratch_shapes=[pltpu.VMEM((tr, J), _COMPUTE_DTYPE)],
        ),
        compiler_params=pltpu.CompilerParams(
            dimension_semantics=("parallel", "parallel", "arbitrary"),
            vmem_limit_bytes=_VMEM_LIMIT),
    )(big3d, small3d, w_big, w_small, bj, wo_p, bo_p)
    return out if V_pad == V else out[..., :V]


@functools.partial(jax.jit, static_argnames=("tm", "tv", "out_dtype"))
def _combine_flat(a2d, b2d, wo, bo, *, tm, tv, out_dtype):
    """a2d, b2d: (M, J) -> (M, V) = tanh(a + b) @ Wo + bo."""
    M, J = a2d.shape
    V = wo.shape[1]
    tm_eff, grid_m = _row_tiling(M, tm)
    wo_p, bo_p, V_pad = _pad_vocab(wo, bo)
    tv_eff, grid_v = _vocab_tiling(V_pad, tv)

    wo_p = wo_p.astype(_COMPUTE_DTYPE)
    bo_p = bo_p.astype(jnp.float32)

    out = pl.pallas_call(
        _combine_kernel,
        out_shape=jax.ShapeDtypeStruct((M, V_pad), out_dtype),
        grid_spec=pltpu.PrefetchScalarGridSpec(
            num_scalar_prefetch=0,
            grid=(grid_m, grid_v),
            in_specs=[
                pl.BlockSpec((tm_eff, J), lambda i, j: (i, 0)),
                pl.BlockSpec((tm_eff, J), lambda i, j: (i, 0)),
                pl.BlockSpec((J, tv_eff), lambda i, j: (0, j)),
                pl.BlockSpec((1, tv_eff), lambda i, j: (0, j)),
            ],
            out_specs=pl.BlockSpec((tm_eff, tv_eff), lambda i, j: (i, j)),
            scratch_shapes=[pltpu.VMEM((tm_eff, J), _COMPUTE_DTYPE)],
        ),
        compiler_params=pltpu.CompilerParams(
            dimension_semantics=("parallel", "arbitrary"),
            vmem_limit_bytes=_VMEM_LIMIT),
    )(a2d, b2d, wo_p, bo_p)
    return out if V_pad == V else out[:, :V]


# ------------------------------ module API -----------------------------------

def init_joiner_params(key, encoder_dim, decoder_dim, joiner_dim, vocab_size):
    """Deterministic synthetic params. Weights stored as (in_dim, out_dim)."""
    k1, k2, k3, k4, k5, k6 = jax.random.split(key, 6)

    def lin(kw, kb, fan_in, fan_out):
        bound = 1.0 / jnp.sqrt(fan_in)
        w = jax.random.uniform(kw, (fan_in, fan_out), jnp.float32, -bound, bound)
        b = jax.random.uniform(kb, (1, fan_out), jnp.float32, -bound, bound)
        return w, b

    we, be = lin(k1, k2, encoder_dim, joiner_dim)
    wd, bd = lin(k3, k4, decoder_dim, joiner_dim)
    wo, bo = lin(k5, k6, joiner_dim, vocab_size)
    return (we, be, wd, bd, wo, bo)


def _bcast_split(big_lead, small_lead, lead):
    """If big_lead == lead and small_lead only broadcasts over a trailing
    group of axes of lead (matching lead exactly on the outer axes), return
    the number of outer axes; else None."""
    if tuple(big_lead) != tuple(lead):
        return None
    k = len(lead)
    sl = (1,) * (k - len(small_lead)) + tuple(small_lead)
    p = k
    while p > 0 and sl[p - 1] == 1:
        p -= 1
    if p == k or sl[:p] != tuple(lead[:p]):
        return None
    return p


def joiner_forward(encoder_out, decoder_out, params, project_input=True,
                   tm=DEFAULT_TM, tv=DEFAULT_TV, out_dtype=jnp.bfloat16):
    """Mirrors Joiner.forward semantics (shape alignment + projections)."""
    assert encoder_out.ndim in (2, 3, 4), encoder_out.ndim
    assert decoder_out.ndim in (2, 3, 4), decoder_out.ndim
    we, be, wd, bd, wo, bo = params
    J, V = wo.shape

    # --- ndim alignment glue (mirrors the PyTorch branches); broadcasts stay
    #     lazy so the kernels operate on the un-broadcast rows. ---
    if encoder_out.ndim != decoder_out.ndim:
        if encoder_out.ndim == 3 and decoder_out.ndim == 2:
            decoder_out = decoder_out[:, None, :]          # expand over T
        elif encoder_out.ndim == 2 and decoder_out.ndim == 3:
            encoder_out = encoder_out[:, None, :]          # expand over T
        elif encoder_out.ndim == 4 and decoder_out.ndim == 3:
            b_, t_, s_, c_ = encoder_out.shape
            encoder_out = encoder_out.reshape(b_, t_ * s_, c_)
        elif encoder_out.ndim == 3 and decoder_out.ndim == 4:
            encoder_out = encoder_out[:, :, None, :]

    enc_lead = encoder_out.shape[:-1]
    dec_lead = decoder_out.shape[:-1]
    lead = tuple(jnp.broadcast_shapes(enc_lead, dec_lead))
    M = math.prod(lead) if lead else 1

    if project_input:
        E = encoder_out.shape[-1]
        D = decoder_out.shape[-1]
        bj = be + bd                                     # fold the two biases

        if enc_lead == lead and dec_lead == lead:
            out2d = _joiner_fused_flat(
                encoder_out.reshape(M, E), decoder_out.reshape(M, D),
                we, wd, bj, wo, bo, tm=tm, tv=tv, out_dtype=out_dtype)
            return out2d.reshape(lead + (V,))

        p = _bcast_split(enc_lead, dec_lead, lead)
        if p is not None:       # encoder is the big side, decoder broadcasts
            ms = math.prod(lead[:p])
            rep = math.prod(lead[p:])
            out3d = _joiner_bcast_flat(
                encoder_out.reshape(ms, rep, E), decoder_out.reshape(ms, 1, D),
                we, wd, bj, wo, bo, tm=tm, tv=tv, out_dtype=out_dtype)
            return out3d.reshape(lead + (V,))

        p = _bcast_split(dec_lead, enc_lead, lead)
        if p is not None:       # decoder is the big side, encoder broadcasts
            ms = math.prod(lead[:p])
            rep = math.prod(lead[p:])
            out3d = _joiner_bcast_flat(
                decoder_out.reshape(ms, rep, D), encoder_out.reshape(ms, 1, E),
                wd, we, bj, wo, bo, tm=tm, tv=tv, out_dtype=out_dtype)
            return out3d.reshape(lead + (V,))

        # Exotic broadcast pattern (both sides broadcast): materialize and use
        # the fused path (correct, just not traffic-optimal).
        enc_b = jnp.broadcast_to(encoder_out, lead + (E,)).reshape(M, E)
        dec_b = jnp.broadcast_to(decoder_out, lead + (D,)).reshape(M, D)
        out2d = _joiner_fused_flat(enc_b, dec_b, we, wd, bj, wo, bo,
                                   tm=tm, tv=tv, out_dtype=out_dtype)
        return out2d.reshape(lead + (V,))

    # project_input=False: inputs must already be joiner_dim sized.
    assert encoder_out.shape[-1] == J and decoder_out.shape[-1] == J, (
        "project_input=False expects inputs already projected to joiner_dim")
    enc = jnp.broadcast_to(encoder_out, lead + (J,)).reshape(M, J)
    dec = jnp.broadcast_to(decoder_out, lead + (J,)).reshape(M, J)
    out2d = _combine_flat(enc, dec, wo, bo, tm=tm, tv=tv, out_dtype=out_dtype)
    return out2d.reshape(lead + (V,))


# ------------------------------ self test ------------------------------------

if __name__ == "__main__":
    key = jax.random.PRNGKey(0)
    (k_enc, k_dec, k_dec2, k_e3, k_d3, k_e4, k_d4, k_par) = jax.random.split(key, 8)

    # Small shapes: batch=2, T=32, encoder_dim=48, decoder_dim=40,
    # joiner_dim=64, vocab_size=250 (exercises vocab padding 250 -> 256 and,
    # with tv=128, a 2x2 (row, vocab) grid per kernel).
    N, T = 2, 32
    encoder_dim, decoder_dim, joiner_dim, vocab_size = 48, 40, 64, 250
    params = init_joiner_params(k_par, encoder_dim, decoder_dim,
                                joiner_dim, vocab_size)
    we, be, wd, bd, wo, bo = params

    encoder_out = jax.random.normal(k_enc, (N, T, encoder_dim), jnp.float32)
    decoder_out = jax.random.normal(k_dec, (N, T, decoder_dim), jnp.float32)

    def ref_joiner(enc, dec):
        return jnp.tanh(enc @ we + be + dec @ wd + bd) @ wo + bo

    tol = dict(atol=5e-2, rtol=5e-2)

    # ---- 1) fused path (matching leading shapes) ----
    logits = joiner_forward(encoder_out, decoder_out, params, tv=128)
    logits = jax.block_until_ready(logits)
    assert logits.shape == (N, T, vocab_size), logits.shape
    assert logits.dtype == jnp.bfloat16, logits.dtype
    ref1 = ref_joiner(encoder_out, decoder_out)
    err1 = float(jnp.max(jnp.abs(logits.astype(jnp.float32) - ref1)))
    assert jnp.allclose(logits.astype(jnp.float32), ref1, **tol), err1

    # ---- 2) broadcast path: encoder (N, T, E) vs decoder (N, D) ----
    decoder_2d = jax.random.normal(k_dec2, (N, decoder_dim), jnp.float32)
    logits_b = joiner_forward(encoder_out, decoder_2d, params, tv=128)
    logits_b = jax.block_until_ready(logits_b)
    assert logits_b.shape == (N, T, vocab_size), logits_b.shape
    ref2 = ref_joiner(encoder_out, decoder_2d[:, None, :])
    err2 = float(jnp.max(jnp.abs(logits_b.astype(jnp.float32) - ref2)))
    assert jnp.allclose(logits_b.astype(jnp.float32), ref2, **tol), err2

    # ---- 3) project_input=False path ----
    enc_j = jax.random.normal(k_e3, (N, T, joiner_dim), jnp.float32)
    dec_j = jax.random.normal(k_d3, (N, T, joiner_dim), jnp.float32)
    logits_np = joiner_forward(enc_j, dec_j, params, project_input=False, tv=128)
    logits_np = jax.block_until_ready(logits_np)
    assert logits_np.shape == (N, T, vocab_size), logits_np.shape
    ref3 = jnp.tanh(enc_j + dec_j) @ wo + bo
    err3 = float(jnp.max(jnp.abs(logits_np.astype(jnp.float32) - ref3)))
    assert jnp.allclose(logits_np.astype(jnp.float32), ref3, **tol), err3

    # ---- 4) exotic broadcast (both sides broadcast) -> materialized fallback ----
    enc_x = jax.random.normal(k_e4, (1, T, encoder_dim), jnp.float32)
    dec_x = jax.random.normal(k_d4, (N, 1, decoder_dim), jnp.float32)
    logits_x = joiner_forward(enc_x, dec_x, params, tv=128)
    logits_x = jax.block_until_ready(logits_x)
    assert logits_x.shape == (N, T, vocab_size), logits_x.shape
    ref4 = ref_joiner(enc_x, dec_x)
    err4 = float(jnp.max(jnp.abs(logits_x.astype(jnp.float32) - ref4)))
    assert jnp.allclose(logits_x.astype(jnp.float32), ref4, **tol), err4

    print("KERNEL_OK")
</pallas_src>

<mosaic_0001>
module attributes {stable_mosaic.version = 11 : i64} {
  func.func @_fused_joiner_kernel(%arg0: i32, %arg1: i32, %arg2: memref<32x48xf32, #tpu.memory_space<vmem>>, %arg3: memref<32x40xf32, #tpu.memory_space<vmem>>, %arg4: memref<48x64xbf16, #tpu.memory_space<vmem>>, %arg5: memref<40x64xbf16, #tpu.memory_space<vmem>>, %arg6: memref<1x64xf32, #tpu.memory_space<vmem>>, %arg7: memref<64x128xbf16, #tpu.memory_space<vmem>>, %arg8: memref<1x128xf32, #tpu.memory_space<vmem>>, %arg9: memref<32x128xbf16, #tpu.memory_space<vmem>>, %arg10: memref<32x64xbf16, #tpu.memory_space<vmem>>) attributes {dimension_semantics = [#tpu.dimension_semantics<parallel>, #tpu.dimension_semantics<arbitrary>], iteration_bounds = array<i64: 2, 2>, scalar_prefetch = 0 : i64, scratch_operands = 1 : i64, tpu.core_type = #tpu.core_type<tc>, window_params = [{transform_indices = @transform_0, window_bounds = array<i64: 32, 48>}, {transform_indices = @transform_1, window_bounds = array<i64: 32, 40>}, {pipeline_mode = #tpu.pipeline_mode<synchronous>, transform_indices = @transform_2, window_bounds = array<i64: 48, 64>}, {pipeline_mode = #tpu.pipeline_mode<synchronous>, transform_indices = @transform_3, window_bounds = array<i64: 40, 64>}, {pipeline_mode = #tpu.pipeline_mode<synchronous>, transform_indices = @transform_4, window_bounds = array<i64: 1, 64>}, {transform_indices = @transform_5, window_bounds = array<i64: 64, 128>}, {transform_indices = @transform_6, window_bounds = array<i64: 1, 128>}, {transform_indices = @transform_7, window_bounds = array<i64: 32, 128>}]} {
    %c0_i32 = arith.constant 0 : i32
    %0 = arith.cmpi eq, %arg1, %c0_i32 : i32
    %1 = arith.extui %0 : i1 to i32
    %c0_i32_0 = arith.constant 0 : i32
    %2 = arith.cmpi ne, %1, %c0_i32_0 : i32
    scf.if %2 {
      %c0_8 = arith.constant 0 : index
      %c0_9 = arith.constant 0 : index
      %11 = vector.load %arg2[%c0_8, %c0_9] : memref<32x48xf32, #tpu.memory_space<vmem>>, vector<32x48xf32>
      %12 = arith.truncf %11 : vector<32x48xf32> to vector<32x48xbf16>
      %c0_10 = arith.constant 0 : index
      %c0_11 = arith.constant 0 : index
      %13 = vector.load %arg4[%c0_10, %c0_11] : memref<48x64xbf16, #tpu.memory_space<vmem>>, vector<48x64xbf16>
      %cst_12 = arith.constant dense<0.000000e+00> : vector<32x64xf32>
      %14 = tpu.matmul %12, %13, %cst_12 {dimension_numbers = #tpu.dot_dimension_numbers<[1], [0], [0], [1], [0, 0, 1, 1], [], []>} : vector<32x48xbf16>, vector<48x64xbf16>, vector<32x64xf32> -> vector<32x64xf32>
      %c0_13 = arith.constant 0 : index
      %c0_14 = arith.constant 0 : index
      %15 = vector.load %arg3[%c0_13, %c0_14] : memref<32x40xf32, #tpu.memory_space<vmem>>, vector<32x40xf32>
      %16 = arith.truncf %15 : vector<32x40xf32> to vector<32x40xbf16>
      %c0_15 = arith.constant 0 : index
      %c0_16 = arith.constant 0 : index
      %17 = vector.load %arg5[%c0_15, %c0_16] : memref<40x64xbf16, #tpu.memory_space<vmem>>, vector<40x64xbf16>
      %cst_17 = arith.constant dense<0.000000e+00> : vector<32x64xf32>
      %18 = tpu.matmul %16, %17, %cst_17 {dimension_numbers = #tpu.dot_dimension_numbers<[1], [0], [0], [1], [0, 0, 1, 1], [], []>} : vector<32x40xbf16>, vector<40x64xbf16>, vector<32x64xf32> -> vector<32x64xf32>
      %19 = arith.addf %14, %18 : vector<32x64xf32>
      %c0_18 = arith.constant 0 : index
      %c0_19 = arith.constant 0 : index
      %20 = vector.load %arg6[%c0_18, %c0_19] : memref<1x64xf32, #tpu.memory_space<vmem>>, vector<1x64xf32>
      %21 = vector.broadcast %20 : vector<1x64xf32> to vector<32x64xf32>
      %22 = arith.addf %19, %21 : vector<32x64xf32>
      %23 = math.tanh %22 : vector<32x64xf32>
      %24 = arith.truncf %23 : vector<32x64xf32> to vector<32x64xbf16>
      %c0_20 = arith.constant 0 : index
      %c0_21 = arith.constant 0 : index
      %25 = vector.load %arg10[%c0_20, %c0_21] : memref<32x64xbf16, #tpu.memory_space<vmem>>, vector<32x64xbf16>
      tpu.vector_store %arg10[%c0_20, %c0_21], %24 {strides = array<i32>} : memref<32x64xbf16, #tpu.memory_space<vmem>>, vector<32x64xbf16>,
    } else {
    }
    %c0 = arith.constant 0 : index
    %c0_1 = arith.constant 0 : index
    %3 = vector.load %arg10[%c0, %c0_1] : memref<32x64xbf16, #tpu.memory_space<vmem>>, vector<32x64xbf16>
    %c0_2 = arith.constant 0 : index
    %c0_3 = arith.constant 0 : index
    %4 = vector.load %arg7[%c0_2, %c0_3] : memref<64x128xbf16, #tpu.memory_space<vmem>>, vector<64x128xbf16>
    %cst = arith.constant dense<0.000000e+00> : vector<32x128xf32>
    %5 = tpu.matmul %3, %4, %cst {dimension_numbers = #tpu.dot_dimension_numbers<[1], [0], [0], [1], [0, 0, 1, 1], [], []>} : vector<32x64xbf16>, vector<64x128xbf16>, vector<32x128xf32> -> vector<32x128xf32>
    %c0_4 = arith.constant 0 : index
    %c0_5 = arith.constant 0 : index
    %6 = vector.load %arg8[%c0_4, %c0_5] : memref<1x128xf32, #tpu.memory_space<vmem>>, vector<1x128xf32>
    %7 = vector.broadcast %6 : vector<1x128xf32> to vector<32x128xf32>
    %8 = arith.addf %5, %7 : vector<32x128xf32>
    %9 = arith.truncf %8 : vector<32x128xf32> to vector<32x128xbf16>
    %c0_6 = arith.constant 0 : index
    %c0_7 = arith.constant 0 : index
    %10 = vector.load %arg9[%c0_6, %c0_7] : memref<32x128xbf16, #tpu.memory_space<vmem>>, vector<32x128xbf16>
    tpu.vector_store %arg9[%c0_6, %c0_7], %9 {strides = array<i32>} : memref<32x128xbf16, #tpu.memory_space<vmem>>, vector<32x128xbf16>,
    return
  }
  func.func @transform_0(%arg0: i32, %arg1: i32) -> (i32, i32) {
    %c0_i32 = arith.constant 0 : i32
    %c0_i32_0 = arith.constant 0 : i32
    return %arg0, %c0_i32 : i32, i32
  }
  func.func @transform_1(%arg0: i32, %arg1: i32) -> (i32, i32) {
    %c0_i32 = arith.constant 0 : i32
    %c0_i32_0 = arith.constant 0 : i32
    return %arg0, %c0_i32 : i32, i32
  }
  func.func @transform_2(%arg0: i32, %arg1: i32) -> (i32, i32) {
    %c0_i32 = arith.constant 0 : i32
    %c0_i32_0 = arith.constant 0 : i32
    %c0_i32_1 = arith.constant 0 : i32
    return %c0_i32, %c0_i32_0 : i32, i32
  }
  func.func @transform_3(%arg0: i32, %arg1: i32) -> (i32, i32) {
    %c0_i32 = arith.constant 0 : i32
    %c0_i32_0 = arith.constant 0 : i32
    %c0_i32_1 = arith.constant 0 : i32
    return %c0_i32, %c0_i32_0 : i32, i32
  }
  func.func @transform_4(%arg0: i32, %arg1: i32) -> (i32, i32) {
    %c0_i32 = arith.constant 0 : i32
    %c0_i32_0 = arith.constant 0 : i32
    %c0_i32_1 = arith.constant 0 : i32
    return %c0_i32, %c0_i32_0 : i32, i32
  }
  func.func @transform_5(%arg0: i32, %arg1: i32) -> (i32, i32) {
    %c0_i32 = arith.constant 0 : i32
    %c0_i32_0 = arith.constant 0 : i32
    return %c0_i32, %arg1 : i32, i32
  }
  func.func @transform_6(%arg0: i32, %arg1: i32) -> (i32, i32) {
    %c0_i32 = arith.constant 0 : i32
    %c0_i32_0 = arith.constant 0 : i32
    return %c0_i32, %arg1 : i32, i32
  }
  func.func @transform_7(%arg0: i32, %arg1: i32) -> (i32, i32) {
    %c0_i32 = arith.constant 0 : i32
    return %arg0, %arg1 : i32, i32
  }
}

</mosaic_0001>

<llo_original>
// kernel: _joiner_fused_flat.1
$region0: #{_joiner_fused_flat.1}
  #allocation0 [shape = 'u32[]', space=smem, size = 0x4, offset = 0x4, fixed_abs, tag = 'smem constant byte address 0x4 - core index']
  #allocation1 [shape = 'u32[144,128]{1,0:T(1,128)}', space=vmem, size = 0x12000, scoped, tag = 'internal scratch']
  #allocation2 [shape = 'bf16[32,64]{1,0:T(16,128)(2,1)}', space=vmem, size = 0x2000, scoped, tag = 'scratch operand']
  %s0 = inlined_call_operand.vmem [shape: f32[64,48], index: 0, kind: input, shape index: {}]
  %s1 = inlined_call_operand.vmem [shape: f32[64,40], index: 1, kind: input, shape index: {}]
  %s2 = inlined_call_operand.vmem [shape: bf16[48,64], index: 2, kind: input, shape index: {}]
  %s3 = inlined_call_operand.vmem [shape: bf16[40,64], index: 3, kind: input, shape index: {}]
  %s4 = inlined_call_operand.vmem [shape: f32[1,64], index: 4, kind: input, shape index: {}]
  %s5 = inlined_call_operand.vmem [shape: bf16[64,256], index: 5, kind: input, shape index: {}]
  %s6 = inlined_call_operand.vmem [shape: f32[1,256], index: 6, kind: input, shape index: {}]
  %s7 = inlined_call_operand.hbm [shape: bf16[64,256], index: 7, kind: output, shape index: {}]
  %s8 = sld [smem:[#allocation0]]
  $region106: #{_joiner_fused_flat.1} parent=0
    _
  %s10 = ssub.s32 1, %s8
  %s11 = scalar_select 0, %s10, %s8
  $region1: #{_joiner_fused_flat.1} parent=0
    #allocation3 [shape = 'u8[32768]{0}', space=vmem, size = 0x8000, scoped, tag = 'input window, operand 5']
    #allocation4 [shape = 'u8[16384]{0}', space=vmem, size = 0x4000, scoped, tag = 'output window, operand 0']
    #allocation5 [shape = 's32[2]{0}', space=sflag, size = 0x8, scoped, tag = 'scoped memory for _joiner_fused_flat.1']
    %12 = vsyncpa [#allocation5], 0
    %s13 = scalar_lea.sflag [#allocation5], 1
    %14 = vsyncpa %s13, 0
    loop: start=0, step=1, limit=6
    $region2: #{_joiner_fused_flat.1} parent=1 // loop_pre_header
      _
    $region3: #{_joiner_fused_flat.1} parent=1 // loop_header
      %s16 = sphi 0, %s20
      %p17 = scmp.ge.s32.totalorder %s16, 6
      %s23 = sphi 0, %s35
      %s24 = sphi 0, %s31
      %s25 = sphi 0, %s23
      %s26 = sphi 0, %s24
      %s27 = sphi 0, %s25
      %s28 = sphi 0, %s26
      %s38 = sphi 0, %s40
      %s41 = sphi 0, %s38
      %s42 = sphi 0, %s41
      %s58 = sphi 0, %s42
      %s64 = sphi 0, %s66
      %s67 = sphi 0, %s64
      %s68 = sphi 0, %s67
      %s84 = sphi 0, %s68
      %s88 = sphi 0, %s88
      %s90 = sphi 0, %s88
      %s91 = sphi 0, %s90
      %s105 = sphi 0, %s91
      %s109 = sphi 0, %s109
      %s111 = sphi 0, %s109
      %s112 = sphi 0, %s111
      %s126 = sphi 0, %s112
      %s130 = sphi 0, %s130
      %s132 = sphi 0, %s130
      %s133 = sphi 0, %s132
      %s147 = sphi 0, %s133
      %s153 = sphi 0, %s155
      %s156 = sphi 0, %s153
      %s157 = sphi 0, %s156
      %s173 = sphi 0, %s157
      %s179 = sphi 0, %s181
      %s182 = sphi 0, %s179
      %s183 = sphi 0, %s182
      %s199 = sphi 0, %s183
      %s207 = sphi 0, %s209
      %s210 = sphi 0, %s207
      %s211 = sphi 0, %s210
      %s227 = sphi 0, %s211
    $region4: #{_joiner_fused_flat.1} parent=1 // loop_header_branch
      %19 = sbr.rel (%p17) target = $region8
    $region5: #{_joiner_fused_flat.1} parent=1 // loop_body
      %s21 = ssub.s32 %s16, 1
      %s22 = ssub.s32 %s16, 2
      %s29 = sadd.s32 1, %s24
      %p30 = scmp.ge.s32.totalorder %s29, 2
      %s31 = scalar_select %p30, 0, %s29
      %s32 = sadd.s32 1, %s23
      %s33 = scalar_select %p30, %s32, %s23
      %p34 = scmp.ge.s32.totalorder %s33, 2
      %s35 = scalar_select %p34, 0, %s33
      %s36 = ssub.s32 %s23, %s35
      %p37 = scmp.eq.s32.totalorder %s36, 0
      %s39 = sadd.s32 %s38, 1
      %s40 = scalar_select %p37, %s38, %s39
      %p43 = pneg %p37
      %p44 = scmp.eq.s32.totalorder %s16, 3
      %p45 = por %p43, %p44
      %p46 = scmp.ne.s32.totalorder %s38, %s41
      %p47 = scmp.eq.s32.totalorder %s16, 0
      %p48 = por %p46, %p47
      %p49 = scmp.ne.s32.totalorder %s38, %s41
      %p50 = scmp.eq.s32.totalorder %s21, 3
      %p51 = por %p49, %p50
      %p52 = scmp.ne.s32.totalorder %s41, %s42
      %p53 = scmp.eq.s32.totalorder %s21, 0
      %p54 = por %p52, %p53
      %p55 = scmp.ne.s32.totalorder %s41, %s42
      %p56 = scmp.eq.s32.totalorder %s22, 3
      %p57 = por %p55, %p56
      %p59 = scmp.ne.s32.totalorder %s42, %s58
      %p60 = scmp.eq.s32.totalorder %s22, 0
      %p61 = por %p59, %p60
      %s62 = ssub.s32 %s23, %s35
      %p63 = scmp.eq.s32.totalorder %s62, 0
      %s65 = sadd.s32 %s64, 1
      %s66 = scalar_select %p63, %s64, %s65
      %p69 = pneg %p63
      %p70 = scmp.eq.s32.totalorder %s16, 3
      %p71 = por %p69, %p70
      %p72 = scmp.ne.s32.totalorder %s64, %s67
      %p73 = scmp.eq.s32.totalorder %s16, 0
      %p74 = por %p72, %p73
      %p75 = scmp.ne.s32.totalorder %s64, %s67
      %p76 = scmp.eq.s32.totalorder %s21, 3
      %p77 = por %p75, %p76
      %p78 = scmp.ne.s32.totalorder %s67, %s68
      %p79 = scmp.eq.s32.totalorder %s21, 0
      %p80 = por %p78, %p79
      %p81 = scmp.ne.s32.totalorder %s67, %s68
      %p82 = scmp.eq.s32.totalorder %s22, 3
      %p83 = por %p81, %p82
      %p85 = scmp.ne.s32.totalorder %s68, %s84
      %p86 = scmp.eq.s32.totalorder %s22, 0
      %p87 = por %p85, %p86
      %s89 = sadd.s32 %s88, 1
      %p92 = scmp.eq.s32.totalorder %s16, 3
      %p93 = scmp.ne.s32.totalorder %s88, %s90
      %p94 = scmp.eq.s32.totalorder %s16, 0
      %p95 = por %p93, %p94
      %p96 = scmp.ne.s32.totalorder %s88, %s90
      %p97 = scmp.eq.s32.totalorder %s21, 3
      %p98 = por %p96, %p97
      %p99 = scmp.ne.s32.totalorder %s90, %s91
      %p100 = scmp.eq.s32.totalorder %s21, 0
      %p101 = por %p99, %p100
      %p102 = scmp.ne.s32.totalorder %s90, %s91
      %p103 = scmp.eq.s32.totalorder %s22, 3
      %p104 = por %p102, %p103
      %p106 = scmp.ne.s32.totalorder %s91, %s105
      %p107 = scmp.eq.s32.totalorder %s22, 0
      %p108 = por %p106, %p107
      %s110 = sadd.s32 %s109, 1
      %p113 = scmp.eq.s32.totalorder %s16, 3
      %p114 = scmp.ne.s32.totalorder %s109, %s111
      %p115 = scmp.eq.s32.totalorder %s16, 0
      %p116 = por %p114, %p115
      %p117 = scmp.ne.s32.totalorder %s109, %s111
      %p118 = scmp.eq.s32.totalorder %s21, 3
      %p119 = por %p117, %p118
      %p120 = scmp.ne.s32.totalorder %s111, %s112
      %p121 = scmp.eq.s32.totalorder %s21, 0
      %p122 = por %p120, %p121
      %p123 = scmp.ne.s32.totalorder %s111, %s112
      %p124 = scmp.eq.s32.totalorder %s22, 3
      %p125 = por %p123, %p124
      %p127 = scmp.ne.s32.totalorder %s112, %s126
      %p128 = scmp.eq.s32.totalorder %s22, 0
      %p129 = por %p127, %p128
      %s131 = sadd.s32 %s130, 1
      %p134 = scmp.eq.s32.totalorder %s16, 3
      %p135 = scmp.ne.s32.totalorder %s130, %s132
      %p136 = scmp.eq.s32.totalorder %s16, 0
      %p137 = por %p135, %p136
      %p138 = scmp.ne.s32.totalorder %s130, %s132
      %p139 = scmp.eq.s32.totalorder %s21, 3
      %p140 = por %p138, %p139
      %p141 = scmp.ne.s32.totalorder %s132, %s133
      %p142 = scmp.eq.s32.totalorder %s21, 0
      %p143 = por %p141, %p142
      %p144 = scmp.ne.s32.totalorder %s132, %s133
      %p145 = scmp.eq.s32.totalorder %s22, 3
      %p146 = por %p144, %p145
      %p148 = scmp.ne.s32.totalorder %s133, %s147
      %p149 = scmp.eq.s32.totalorder %s22, 0
      %p150 = por %p148, %p149
      %s151 = ssub.s32 %s24, %s31
      %p152 = scmp.eq.s32.totalorder %s151, 0
      %s154 = sadd.s32 %s153, 1
      %s155 = scalar_select %p152, %s153, %s154
      %p158 = pneg %p152
      %p159 = scmp.eq.s32.totalorder %s16, 3
      %p160 = por %p158, %p159
      %p161 = scmp.ne.s32.totalorder %s153, %s156
      %p162 = scmp.eq.s32.totalorder %s16, 0
      %p163 = por %p161, %p162
      %p164 = scmp.ne.s32.totalorder %s153, %s156
      %p165 = scmp.eq.s32.totalorder %s21, 3
      %p166 = por %p164, %p165
      %p167 = scmp.ne.s32.totalorder %s156, %s157
      %p168 = scmp.eq.s32.totalorder %s21, 0
      %p169 = por %p167, %p168
      %p170 = scmp.ne.s32.totalorder %s156, %s157
      %p171 = scmp.eq.s32.totalorder %s22, 3
      %p172 = por %p170, %p171
      %p174 = scmp.ne.s32.totalorder %s157, %s173
      %p175 = scmp.eq.s32.totalorder %s22, 0
      %p176 = por %p174, %p175
      %s177 = ssub.s32 %s24, %s31
      %p178 = scmp.eq.s32.totalorder %s177, 0
      %s180 = sadd.s32 %s179, 1
      %s181 = scalar_select %p178, %s179, %s180
      %p184 = pneg %p178
      %p185 = scmp.eq.s32.totalorder %s16, 3
      %p186 = por %p184, %p185
      %p187 = scmp.ne.s32.totalorder %s179, %s182
      %p188 = scmp.eq.s32.totalorder %s16, 0
      %p189 = por %p187, %p188
      %p190 = scmp.ne.s32.totalorder %s179, %s182
      %p191 = scmp.eq.s32.totalorder %s21, 3
      %p192 = por %p190, %p191
      %p193 = scmp.ne.s32.totalorder %s182, %s183
      %p194 = scmp.eq.s32.totalorder %s21, 0
      %p195 = por %p193, %p194
      %p196 = scmp.ne.s32.totalorder %s182, %s183
      %p197 = scmp.eq.s32.totalorder %s22, 3
      %p198 = por %p196, %p197
      %p200 = scmp.ne.s32.totalorder %s183, %s199
      %p201 = scmp.eq.s32.totalorder %s22, 0
      %p202 = por %p200, %p201
      %s203 = ssub.s32 %s23, %s35
      %s204 = ssub.s32 %s24, %s31
      %s205 = sor.u32 %s203, %s204
      %p206 = scmp.eq.s32.totalorder %s205, 0
      %s208 = sadd.s32 %s207, 1
      %s209 = scalar_select %p206, %s207, %s208
      %p212 = pneg %p206
      %p213 = scmp.eq.s32.totalorder %s16, 3
      %p214 = por %p212, %p213
      %p215 = scmp.ne.s32.totalorder %s207, %s210
      %p216 = scmp.eq.s32.totalorder %s16, 0
      %p217 = por %p215, %p216
      %p218 = scmp.ne.s32.totalorder %s207, %s210
      %p219 = scmp.eq.s32.totalorder %s21, 3
      %p220 = por %p218, %p219
      %p221 = scmp.ne.s32.totalorder %s210, %s211
      %p222 = scmp.eq.s32.totalorder %s21, 0
      %p223 = por %p221, %p222
      %p224 = scmp.ne.s32.totalorder %s210, %s211
      %p225 = scmp.eq.s32.totalorder %s22, 3
      %p226 = por %p224, %p225
      %p228 = scmp.ne.s32.totalorder %s211, %s227
      %p229 = scmp.eq.s32.totalorder %s22, 0
      %p230 = por %p228, %p229
      %p231 = scmp.le.s32.totalorder 1, %s16
      %p232 = scmp.lt.s32.totalorder %s16, 5
      %p233 = pnand %p231, %p232
      %p234 = pneg %p233
      // Predicated region
      $region9: #{_joiner_fused_flat.1} parent=5 // pred_check
        _
      $region10: #{_joiner_fused_flat.1} parent=5 // pred_check_branch
        %236 = sbr.rel (%p233) target = $region12
      $region11: #{_joiner_fused_flat.1} parent=5 // pred_region
        %s237 = ssub.s32 %s16, 1
        // Predicated region
        $region13: #{_joiner_fused_flat.1} parent=11 // pred_check
          %p238 = pneg %p101
        $region14: #{_joiner_fused_flat.1} parent=11 // pred_check_branch
          %240 = sbr.rel (%p238) target = $region16
        $region15: #{_joiner_fused_flat.1} parent=11 // pred_region
          _
        $region16: #{_joiner_fused_flat.1} parent=11 // pred_fallthru
          _
        // Predicated region
        $region17: #{_joiner_fused_flat.1} parent=11 // pred_check
          %p241 = pneg %p122
        $region18: #{_joiner_fused_flat.1} parent=11 // pred_check_branch
          %243 = sbr.rel (%p241) target = $region20
        $region19: #{_joiner_fused_flat.1} parent=11 // pred_region
          _
        $region20: #{_joiner_fused_flat.1} parent=11 // pred_fallthru
          _
        // Predicated region
        $region21: #{_joiner_fused_flat.1} parent=11 // pred_check
          %p244 = pneg %p143
        $region22: #{_joiner_fused_flat.1} parent=11 // pred_check_branch
          %246 = sbr.rel (%p244) target = $region24
        $region23: #{_joiner_fused_flat.1} parent=11 // pred_region
          _
        $region24: #{_joiner_fused_flat.1} parent=11 // pred_fallthru
          _
      $region12: #{_joiner_fused_flat.1} parent=5 // pred_fallthru
        _
      %p247 = scmp.lt.s32.totalorder %s16, 4
      // Predicated region
      $region25: #{_joiner_fused_flat.1} parent=5 // pred_check
        %p248 = pneg %p247
      $region26: #{_joiner_fused_flat.1} parent=5 // pred_check_branch
        %250 = sbr.rel (%p248) target = $region28
      $region27: #{_joiner_fused_flat.1} parent=5 // pred_region
        // Predicated region
        $region29: #{_joiner_fused_flat.1} parent=27 // pred_check
          %p251 = pneg %p48
        $region30: #{_joiner_fused_flat.1} parent=27 // pred_check_branch
          %253 = sbr.rel (%p251) target = $region32
        $region31: #{_joiner_fused_flat.1} parent=27 // pred_region
          %s254 = smul.u32 4, %s23
          %p255 = scmp.lt.s32.totalorder %s254, 7
          %s256 = scalar_select %p255, %s254, 7
          %s257 = smul.addr %s256, 8
          %s258 = scalar_lea.vmem %s0, %s257
          %s259 = smul.u32 4, %s23
        $region32: #{_joiner_fused_flat.1} parent=27 // pred_fallthru
          _
        // Predicated region
        $region33: #{_joiner_fused_flat.1} parent=27 // pred_check
          %p260 = pneg %p74
        $region34: #{_joiner_fused_flat.1} parent=27 // pred_check_branch
          %262 = sbr.rel (%p260) target = $region36
        $region35: #{_joiner_fused_flat.1} parent=27 // pred_region
          %s263 = smul.u32 4, %s23
          %p264 = scmp.lt.s32.totalorder %s263, 7
          %s265 = scalar_select %p264, %s263, 7
          %s266 = smul.addr %s265, 8
          %s267 = scalar_lea.vmem %s1, %s266
          %s268 = smul.u32 4, %s23
        $region36: #{_joiner_fused_flat.1} parent=27 // pred_fallthru
          _
        // Predicated region
        $region37: #{_joiner_fused_flat.1} parent=27 // pred_check
          %p269 = pneg %p163
        $region38: #{_joiner_fused_flat.1} parent=27 // pred_check_branch
          %271 = sbr.rel (%p269) target = $region40
        $region39: #{_joiner_fused_flat.1} parent=27 // pred_region
          %s272 = sand.u32 %s153, 1
          %s273 = sand.u32 %s153, 1
          %s274 = smul.addr %s273, 32
          %s275 = scalar_lea.vmem [#allocation3], %s274
          %s276 = smul.addr %s24, 4
          %s277 = scalar_lea.vmem %s5, %s276
          // Predicated region
          $region41: #{_joiner_fused_flat.1} parent=39 // pred_check
            _
          $region42: #{_joiner_fused_flat.1} parent=39 // pred_check_branch
            %279 = sbr.rel (0) target = $region44
          $region43: #{_joiner_fused_flat.1} parent=39 // pred_region
            // Predicated region
            $region45: #{_joiner_fused_flat.1} parent=43 // pred_check
              _
            $region46: #{_joiner_fused_flat.1} parent=43 // pred_check_branch
              %281 = sbr.rel target = $region48
            $region47: #{_joiner_fused_flat.1} parent=43 // pred_region
              // Predicated region
              $region60: #{_joiner_fused_flat.1} parent=47 // pred_check
                _
              $region61: #{_joiner_fused_flat.1} parent=47 // pred_check_branch
                %310 = sbr.rel (0) target = $region63
              $region62: #{_joiner_fused_flat.1} parent=47 // pred_region
                loop: start=0, step=1, limit=1
                $region64: #{_joiner_fused_flat.1} parent=62 // loop_pre_header
                  _
                $region65: #{_joiner_fused_flat.1} parent=62 // loop_header
                  %s312 = sphi 0, %s316
                  %p313 = scmp.ge.s32.totalorder %s312, 1
                  %s317 = sphi %s277, %s277
                  %s318 = sphi %s275, %s275
                $region66: #{_joiner_fused_flat.1} parent=62 // loop_header_branch
                  %315 = sbr.rel (%p313) target = $region70
                $region67: #{_joiner_fused_flat.1} parent=62 // loop_body
                  _
                $region68: #{_joiner_fused_flat.1} parent=62 // loop_footer
                  %s316 = sadd.s32 1, %s312
                $region69: #{_joiner_fused_flat.1} parent=62 // loop_footer_branch
                  %311 = sbr.rel target = $region65
                $region70: #{_joiner_fused_flat.1} parent=62 // loop_exit
                  _
                loop: start=0, step=1, limit=1
                $region71: #{_joiner_fused_flat.1} parent=62 // loop_pre_header
                  _
                $region72: #{_joiner_fused_flat.1} parent=62 // loop_header
                  %s321 = sphi 0, %s325
                  %p322 = scmp.ge.s32.totalorder %s321, 1
                  %s326 = sphi %s277, %s277
                  %s327 = sphi %s275, %s275
                $region73: #{_joiner_fused_flat.1} parent=62 // loop_header_branch
                  %324 = sbr.rel (%p322) target = $region77
                $region74: #{_joiner_fused_flat.1} parent=62 // loop_body
                  %v328 = vld [vmem:[%s326] sm:$0xf]
                  %329 = vst [vmem:[%s327] sm:$0xf] %v328
                  %v330 = vld [vmem:[%s326 + $0x8] sm:$0xf]
                  %331 = vst [vmem:[%s327 + $0x4] sm:$0xf] %v330
                  %v332 = vld [vmem:[%s326 + $0x10] sm:$0xf]
                  %333 = vst [vmem:[%s327 + $0x8] sm:$0xf] %v332
                  %v334 = vld [vmem:[%s326 + $0x18] sm:$0xf]
                  %335 = vst [vmem:[%s327 + $0xc] sm:$0xf] %v334
                  %v336 = vld [vmem:[%s326 + $0x20] sm:$0xf]
                  %337 = vst [vmem:[%s327 + $0x10] sm:$0xf] %v336
                  %v338 = vld [vmem:[%s326 + $0x28] sm:$0xf]
                  %339 = vst [vmem:[%s327 + $0x14] sm:$0xf] %v338
                  %v340 = vld [vmem:[%s326 + $0x30] sm:$0xf]
                  %341 = vst [vmem:[%s327 + $0x18] sm:$0xf] %v340
                  %v342 = vld [vmem:[%s326 + $0x38] sm:$0xf]
                  %343 = vst [vmem:[%s327 + $0x1c] sm:$0xf] %v342
                $region75: #{_joiner_fused_flat.1} parent=62 // loop_footer
                  %s325 = sadd.s32 1, %s321
                $region76: #{_joiner_fused_flat.1} parent=62 // loop_footer_branch
                  %320 = sbr.rel target = $region72
                $region77: #{_joiner_fused_flat.1} parent=62 // loop_exit
                  _
              $region63: #{_joiner_fused_flat.1} parent=47 // pred_fallthru
                _
            $region48: #{_joiner_fused_flat.1} parent=43 // pred_fallthru
              _
            // Predicated region
            $region49: #{_joiner_fused_flat.1} parent=43 // pred_check
              _
            $region50: #{_joiner_fused_flat.1} parent=43 // pred_check_branch
              %283 = sbr.rel (0) target = $region52
            $region51: #{_joiner_fused_flat.1} parent=43 // pred_region
              loop: start=0, step=1, limit=1
              $region53: #{_joiner_fused_flat.1} parent=51 // loop_pre_header
                _
              $region54: #{_joiner_fused_flat.1} parent=51 // loop_header
                %s286 = sphi 0, %s290
                %p287 = scmp.ge.s32.totalorder %s286, 1
                %s291 = sphi %s277, %s277
                %s292 = sphi %s275, %s275
              $region55: #{_joiner_fused_flat.1} parent=51 // loop_header_branch
                %289 = sbr.rel (%p287) target = $region59
              $region56: #{_joiner_fused_flat.1} parent=51 // loop_body
                %v293 = vld [vmem:[%s291] sm:$0xf]
                %294 = vst [vmem:[%s292] sm:$0xf] %v293
                %v295 = vld [vmem:[%s291 + $0x8] sm:$0xf]
                %296 = vst [vmem:[%s292 + $0x4] sm:$0xf] %v295
                %v297 = vld [vmem:[%s291 + $0x10] sm:$0xf]
                %298 = vst [vmem:[%s292 + $0x8] sm:$0xf] %v297
                %v299 = vld [vmem:[%s291 + $0x18] sm:$0xf]
                %300 = vst [vmem:[%s292 + $0xc] sm:$0xf] %v299
                %v301 = vld [vmem:[%s291 + $0x20] sm:$0xf]
                %302 = vst [vmem:[%s292 + $0x10] sm:$0xf] %v301
                %v303 = vld [vmem:[%s291 + $0x28] sm:$0xf]
                %304 = vst [vmem:[%s292 + $0x14] sm:$0xf] %v303
                %v305 = vld [vmem:[%s291 + $0x30] sm:$0xf]
                %306 = vst [vmem:[%s292 + $0x18] sm:$0xf] %v305
                %v307 = vld [vmem:[%s291 + $0x38] sm:$0xf]
                %308 = vst [vmem:[%s292 + $0x1c] sm:$0xf] %v307
              $region57: #{_joiner_fused_flat.1} parent=51 // loop_footer
                %s290 = sadd.s32 1, %s286
              $region58: #{_joiner_fused_flat.1} parent=51 // loop_footer_branch
                %285 = sbr.rel target = $region54
              $region59: #{_joiner_fused_flat.1} parent=51 // loop_exit
                _
            $region52: #{_joiner_fused_flat.1} parent=43 // pred_fallthru
              _
          $region44: #{_joiner_fused_flat.1} parent=39 // pred_fallthru
            _
          %344 = vnop
        $region40: #{_joiner_fused_flat.1} parent=27 // pred_fallthru
          _
        // Predicated region
        $region78: #{_joiner_fused_flat.1} parent=27 // pred_check
          %p345 = pneg %p189
        $region79: #{_joiner_fused_flat.1} parent=27 // pred_check_branch
          %347 = sbr.rel (%p345) target = $region81
        $region80: #{_joiner_fused_flat.1} parent=27 // pred_region
          %p348 = scmp.lt.s32.totalorder %s24, 1
          %s349 = scalar_select %p348, %s24, 1
          %s350 = scalar_lea.vmem %s6, %s349
        $region81: #{_joiner_fused_flat.1} parent=27 // pred_fallthru
          _
      $region28: #{_joiner_fused_flat.1} parent=5 // pred_fallthru
        _
      %p351 = scmp.le.s32.totalorder 1, %s16
      %p352 = scmp.lt.s32.totalorder %s16, 5
      %p353 = pnand %p351, %p352
      %p354 = pneg %p353
      // Predicated region
      $region82: #{_joiner_fused_flat.1} parent=5 // pred_check
        _
      $region83: #{_joiner_fused_flat.1} parent=5 // pred_check_branch
        %356 = sbr.rel (%p353) target = $region85
      $region84: #{_joiner_fused_flat.1} parent=5 // pred_region
        %s357 = ssub.s32 %s16, 1
        %s358 = sand.u32 %s156, 1
        %s359 = sand.u32 %s156, 1
        %s360 = smul.addr %s359, 32
        %s361 = scalar_lea.vmem [#allocation3], %s360
        // Predicated region
        $region86: #{_joiner_fused_flat.1} parent=84 // pred_check
          %p362 = pneg %p169
        $region87: #{_joiner_fused_flat.1} parent=84 // pred_check_branch
          %364 = sbr.rel (%p362) target = $region89
        $region88: #{_joiner_fused_flat.1} parent=84 // pred_region
          _
        $region89: #{_joiner_fused_flat.1} parent=84 // pred_fallthru
          _
        %s365 = smul.u32 4, %s25
        %p366 = scmp.lt.s32.totalorder %s365, 7
        %s367 = scalar_select %p366, %s365, 7
        %s368 = smul.addr %s367, 8
        %s369 = scalar_lea.vmem %s0, %s368
        %p370 = pneg %p54
        %p371 = pneg %p51
        %s372 = smul.u32 4, %s25
        %p373 = scmp.lt.s32.totalorder %s372, 7
        %s374 = scalar_select %p373, %s372, 7
        %s375 = smul.addr %s374, 8
        %s376 = scalar_lea.vmem %s1, %s375
        %p377 = pneg %p80
        %p378 = pneg %p77
        %p379 = pneg %p101
        %p380 = pneg %p98
        %p381 = pneg %p122
        %p382 = pneg %p119
        %p383 = pneg %p143
        %p384 = pneg %p140
        %s385 = sand.u32 %s156, 1
        %s386 = sand.u32 %s156, 1
        %s387 = smul.addr %s386, 32
        %s388 = scalar_lea.vmem [#allocation3], %s387
        %p389 = pneg %p169
        %p390 = pneg %p166
        %p391 = scmp.lt.s32.totalorder %s26, 1
        %s392 = scalar_select %p391, %s26, 1
        %s393 = scalar_lea.vmem %s6, %s392
        %p394 = pneg %p195
        %p395 = pneg %p192
        %p396 = pneg %p223
        %p397 = pneg %p220
        %s398 = sand.u32 %s210, 1
        %s399 = scalar_lea.sflag [#allocation5], %s398
        %s400 = sand.u32 %s210, 1
        %s401 = smul.addr %s400, 16
        %s402 = scalar_lea.vmem [#allocation4], %s401
        %s403 = smul.u32 4, %s25
        %p404 = scmp.lt.s32.totalorder %s403, 7
        %s405 = scalar_select %p404, %s403, 7
        %s406 = smul.addr %s405, 8
        %s407 = scalar_lea.vmem %s0, %s406
        %s408 = smul.u32 4, %s25
        %s409 = smul.u32 4, %s25
        %p410 = scmp.lt.s32.totalorder %s409, 7
        %s411 = scalar_select %p410, %s409, 7
        %s412 = smul.addr %s411, 8
        %s413 = scalar_lea.vmem %s1, %s412
        %s414 = smul.u32 4, %s25
        %p415 = scmp.lt.s32.totalorder %s26, 1
        %s416 = scalar_select %p415, %s26, 1
        %s417 = scalar_lea.vmem %s6, %s416
        %s418 = smul.u32 4, %s25
        %p420 = scmp.eq.s32.totalorder %s26, 0
        // Predicated region
        $region90: #{_joiner_fused_flat.1} parent=84 // pred_check
          %p421 = pneg %p420
        $region91: #{_joiner_fused_flat.1} parent=84 // pred_check_branch
          %423 = sbr.rel (%p421) target = $region93
        $region92: #{_joiner_fused_flat.1} parent=84 // pred_region
          %v424 = vld [vmem:[%s407] sm:$0xff]
          %v425 = vld [vmem:[%s407 + $0x8] sm:$0xff]
          %v426 = vld [vmem:[%s407 + $0x10] sm:$0xff]
          %v427 = vld [vmem:[%s407 + $0x18] sm:$0xff]
          %v428 = vpack.c.bf16 %v425, %v424
          %v429 = vpack.c.bf16 %v427, %v426
          %v430 = vld [vmem:[%s2] sm:$0xf]
          %v431 = vld [vmem:[%s2 + $0x4] sm:$0xf]
          %v432 = vld [vmem:[%s2 + $0x8] sm:$0xf]
          %v433 = vld [vmem:[%s2 + $0xc] sm:$0xf]
          %v434 = vld [vmem:[%s2 + $0x10] sm:$0xf]
          %v435 = vld [vmem:[%s2 + $0x14] sm:$0xf]
          %v436 = vld [vmem:[%s413] sm:$0xff]
          %v437 = vld [vmem:[%s413 + $0x8] sm:$0xff]
          %v438 = vld [vmem:[%s413 + $0x10] sm:$0xff]
          %v439 = vld [vmem:[%s413 + $0x18] sm:$0xff]
          %v440 = vpack.c.bf16 %v437, %v436
          %v441 = vpack.c.bf16 %v439, %v438
          %v442 = vld [vmem:[%s3] sm:$0xf]
          %v443 = vld [vmem:[%s3 + $0x4] sm:$0xf]
          %v444 = vld [vmem:[%s3 + $0x8] sm:$0xf]
          %v445 = vld [vmem:[%s3 + $0xc] sm:$0xf]
          %v446 = vld [vmem:[%s3 + $0x10] sm:$0xf]
          %v452 = vunpack.c.l.b16 %v442
          %v453 = vunpack.c.l.b16 %v443
          %v454 = vunpack.c.l.b16 %v444
          %v455 = vunpack.c.l.b16 %v445
          %v456 = vunpack.c.l.b16 %v446
          %v457 = vpack.c.b16 %v453, %v452
          %v458 = vpack.c.b16 %v455, %v454
          %v459 = vpack.c.b16 %v456, %v456
          %vm462 = vcmask 326656
          %v464 = vsel %vm462, %v440, 0
          %v467 = vsel %vm462, %v441, 0
          %vm469 = vcmask 1043456
          %v471 = vsel %vm469, %v459, 0
          %473 = vmatprep.subr.bf16.mxu0 0
          %474 = vmatpush1.bf16.msra.mxu0 %v457
          %475 = vmatprep.subr.bf16.mxu0 0
          %476 = vmatpush1.bf16.msra.mxu0 %v458
          %477 = vmatprep.subr.bf16.mxu0 0
          %478 = vmatpush1.bf16.msra.mxu0 %v471
          %479 = vmatprep.subr.bf16.mxu0 0
          %480 = vmatpush1.bf16.msra.mxu0 0
          %481 = vmatprep.subr.bf16.mxu0 0
          %482 = vmatpush1.bf16.msra.mxu0 0
          %483 = vmatprep.subr.bf16.mxu0 0
          %484 = vmatpush1.bf16.msra.mxu0 0
          %485 = vmatprep.subr.bf16.mxu0 0
          %486 = vmatpush1.bf16.msra.mxu0 0
          %487 = vmatprep.subr.bf16.mxu0 0
          %488 = vmatpush1.bf16.msra.mxu0 0
          %489 = vmatprep.subr.bf16.mxu0 0
          %490 = vmatpush1.bf16.msra.mxu0 0
          %491 = vmatprep.subr.bf16.mxu0 0
          %492 = vmatpush1.bf16.msra.mxu0 0
          %493 = vmatprep.subr.bf16.mxu0 0
          %494 = vmatpush1.bf16.msra.mxu0 0
          %495 = vmatprep.subr.bf16.mxu0 0
          %496 = vmatpush1.bf16.msra.mxu0 0
          %497 = vmatprep.subr.bf16.mxu0 0
          %498 = vmatpush1.bf16.msra.mxu0 0
          %499 = vmatprep.subr.bf16.mxu0 0
          %500 = vmatpush1.bf16.msra.mxu0 0
          %501 = vmatprep.subr.bf16.mxu0 0
          %502 = vmatpush1.bf16.msra.mxu0 0
          %503 = vmatprep.subr.bf16.mxu0 0
          %504 = vmatpush1.bf16.msra.mxu0 0
          %505 = vmatprep.mubr.bf16.mxu0 0
          %506 = vmatmul.mubr.bf16.gmra.mrb[0].mxu0 %v464
          %v507 = vpop.f32.mrb[0].mxu0
          %v508 = vadd.f32 0.0, %v507
          %v509 = vpop.f32.mrb[0].mxu0
          %v510 = vpop.f32.mrb[0].mxu0
          %v511 = vadd.f32 0.0, %v510
          %v512 = vpop.f32.mrb[0].mxu0
          %513 = vmatprep.mubr.bf16.mxu0 0
          %514 = vmatmul.mubr.bf16.gmra.mrb[0].mxu0 %v467
          %v515 = vpop.f32.mrb[0].mxu0
          %v516 = vadd.f32 0.0, %v515
          %v517 = vpop.f32.mrb[0].mxu0
          %v518 = vpop.f32.mrb[0].mxu0
          %v519 = vadd.f32 0.0, %v518
          %v520 = vpop.f32.mrb[0].mxu0
          %521 = vdwg.mxu0
          %v528 = vunpack.c.l.b16 %v430
          %v529 = vunpack.c.l.b16 %v431
          %v530 = vunpack.c.l.b16 %v432
          %v531 = vunpack.c.l.b16 %v433
          %v532 = vunpack.c.l.b16 %v434
          %v533 = vunpack.c.l.b16 %v435
          %v534 = vpack.c.b16 %v529, %v528
          %v535 = vpack.c.b16 %v531, %v530
          %v536 = vpack.c.b16 %v533, %v532
          %vm540 = vcmask 392192
          %v542 = vsel %vm540, %v428, 0
          %v545 = vsel %vm540, %v429, 0
          %547 = vmatprep.subr.bf16.mxu0 0
          %548 = vmatpush1.bf16.msra.mxu0 %v534
          %549 = vmatprep.subr.bf16.mxu0 0
          %550 = vmatpush1.bf16.msra.mxu0 %v535
          %551 = vmatprep.subr.bf16.mxu0 0
          %552 = vmatpush1.bf16.msra.mxu0 %v536
          %553 = vmatprep.subr.bf16.mxu0 0
          %554 = vmatpush1.bf16.msra.mxu0 0
          %555 = vmatprep.subr.bf16.mxu0 0
          %556 = vmatpush1.bf16.msra.mxu0 0
          %557 = vmatprep.subr.bf16.mxu0 0
          %558 = vmatpush1.bf16.msra.mxu0 0
          %559 = vmatprep.subr.bf16.mxu0 0
          %560 = vmatpush1.bf16.msra.mxu0 0
          %561 = vmatprep.subr.bf16.mxu0 0
          %562 = vmatpush1.bf16.msra.mxu0 0
          %563 = vmatprep.subr.bf16.mxu0 0
          %564 = vmatpush1.bf16.msra.mxu0 0
          %565 = vmatprep.subr.bf16.mxu0 0
          %566 = vmatpush1.bf16.msra.mxu0 0
          %567 = vmatprep.subr.bf16.mxu0 0
          %568 = vmatpush1.bf16.msra.mxu0 0
          %569 = vmatprep.subr.bf16.mxu0 0
          %570 = vmatpush1.bf16.msra.mxu0 0
          %571 = vmatprep.subr.bf16.mxu0 0
          %572 = vmatpush1.bf16.msra.mxu0 0
          %573 = vmatprep.subr.bf16.mxu0 0
          %574 = vmatpush1.bf16.msra.mxu0 0
          %575 = vmatprep.subr.bf16.mxu0 0
          %576 = vmatpush1.bf16.msra.mxu0 0
          %577 = vmatprep.subr.bf16.mxu0 0
          %578 = vmatpush1.bf16.msra.mxu0 0
          %579 = vmatprep.mubr.bf16.mxu0 0
          %580 = vmatmul.mubr.bf16.gmra.mrb[0].mxu0 %v542
          %v581 = vpop.f32.mrb[0].mxu0
          %v582 = vadd.f32 %v508, %v581
          %v583 = vpop.f32.mrb[0].mxu0
          %v584 = vpop.f32.mrb[0].mxu0
          %v585 = vadd.f32 %v511, %v584
          %v586 = vpop.f32.mrb[0].mxu0
          %587 = vmatprep.mubr.bf16.mxu0 0
          %588 = vmatmul.mubr.bf16.gmra.mrb[0].mxu0 %v545
          %v589 = vpop.f32.mrb[0].mxu0
          %v590 = vadd.f32 %v516, %v589
          %v591 = vpop.f32.mrb[0].mxu0
          %v592 = vpop.f32.mrb[0].mxu0
          %v593 = vadd.f32 %v519, %v592
          %v594 = vpop.f32.mrb[0].mxu0
          %595 = vdwg.mxu0
          %v596 = vld [vmem:[%s4] sm:$0x1]
          %v598 = vlaneseq
          %v599 = vshrl.u32 %v598, 7
          %v600 = vsub.s32 0, %v599
          %v601 = vrot.slane %v596, %v600
          %v603 = vadd.f32 %v582, %v601
          %v604 = vadd.f32 %v585, %v601
          %v605 = vadd.f32 %v590, %v601
          %v606 = vadd.f32 %v593, %v601
          %v607 = vtanh.pop %v603
          %v608 = vtanh.pop %v604
          %v609 = vtanh.pop %v605
          %v610 = vtanh.pop %v606
          %v611 = vpack.c.bf16 %v608, %v607
          %v612 = vpack.c.bf16 %v610, %v609
          %vm613 = vcmask 523264
          %614 = vst.msk [vmem:[#allocation2] sm:$0xff] %vm613, %v611
          %615 = vst.msk [vmem:[#allocation2 + $0x8] sm:$0xff] %vm613, %v612
        $region93: #{_joiner_fused_flat.1} parent=84 // pred_fallthru
          _
        %v616 = vld [vmem:[#allocation2] sm:$0xff]
        %v617 = vld [vmem:[#allocation2 + $0x8] sm:$0xff]
        %v618 = vld [vmem:[%s361] sm:$0xf]
        %v619 = vld [vmem:[%s361 + $0x4] sm:$0xf]
        %v620 = vld [vmem:[%s361 + $0x8] sm:$0xf]
        %v621 = vld [vmem:[%s361 + $0xc] sm:$0xf]
        %v622 = vld [vmem:[%s361 + $0x10] sm:$0xf]
        %v623 = vld [vmem:[%s361 + $0x14] sm:$0xf]
        %v624 = vld [vmem:[%s361 + $0x18] sm:$0xf]
        %v625 = vld [vmem:[%s361 + $0x1c] sm:$0xf]
        %v626 = vld [vmem:[%s417] sm:$0x1]
        %v628 = vlaneseq
        %v629 = vshrl.u32 %v628, 7
        %v630 = vsub.s32 0, %v629
        %v631 = vrot.slane %v626, %v630
        %v641 = vunpack.c.l.b16 %v618
        %v642 = vunpack.c.l.b16 %v619
        %v643 = vunpack.c.l.b16 %v620
        %v644 = vunpack.c.l.b16 %v621
        %v645 = vunpack.c.l.b16 %v622
        %v646 = vunpack.c.l.b16 %v623
        %v647 = vunpack.c.l.b16 %v624
        %v648 = vunpack.c.l.b16 %v625
        %v649 = vpack.c.b16 %v642, %v641
        %v650 = vpack.c.b16 %v644, %v643
        %v651 = vpack.c.b16 %v646, %v645
        %v652 = vpack.c.b16 %v648, %v647
        %vm657 = vcmask 523264
        %v659 = vsel %vm657, %v616, 0
        %v662 = vsel %vm657, %v617, 0
        %664 = vmatprep.subr.bf16.mxu0 0
        %665 = vmatpush1.bf16.msra.mxu0 %v649
        %666 = vmatprep.subr.bf16.mxu0 0
        %667 = vmatpush1.bf16.msra.mxu0 %v650
        %668 = vmatprep.subr.bf16.mxu0 0
        %669 = vmatpush1.bf16.msra.mxu0 %v651
        %670 = vmatprep.subr.bf16.mxu0 0
        %671 = vmatpush1.bf16.msra.mxu0 %v652
        %672 = vmatprep.subr.bf16.mxu0 0
        %673 = vmatpush1.bf16.msra.mxu0 0
        %674 = vmatprep.subr.bf16.mxu0 0
        %675 = vmatpush1.bf16.msra.mxu0 0
        %676 = vmatprep.subr.bf16.mxu0 0
        %677 = vmatpush1.bf16.msra.mxu0 0
        %678 = vmatprep.subr.bf16.mxu0 0
        %679 = vmatpush1.bf16.msra.mxu0 0
        %680 = vmatprep.subr.bf16.mxu0 0
        %681 = vmatpush1.bf16.msra.mxu0 0
        %682 = vmatprep.subr.bf16.mxu0 0
        %683 = vmatpush1.bf16.msra.mxu0 0
        %684 = vmatprep.subr.bf16.mxu0 0
        %685 = vmatpush1.bf16.msra.mxu0 0
        %686 = vmatprep.subr.bf16.mxu0 0
        %687 = vmatpush1.bf16.msra.mxu0 0
        %688 = vmatprep.subr.bf16.mxu0 0
        %689 = vmatpush1.bf16.msra.mxu0 0
        %690 = vmatprep.subr.bf16.mxu0 0
        %691 = vmatpush1.bf16.msra.mxu0 0
        %692 = vmatprep.subr.bf16.mxu0 0
        %693 = vmatpush1.bf16.msra.mxu0 0
        %694 = vmatprep.subr.bf16.mxu0 0
        %695 = vmatpush1.bf16.msra.mxu0 0
        %696 = vmatprep.mubr.bf16.mxu0 0
        %697 = vmatmul.mubr.bf16.gmra.mrb[0].mxu0 %v659
        %v698 = vpop.f32.mrb[0].mxu0
        %v699 = vadd.f32 %v631, %v698
        %v700 = vpop.f32.mrb[0].mxu0
        %v701 = vpop.f32.mrb[0].mxu0
        %v702 = vadd.f32 %v631, %v701
        %v703 = vpop.f32.mrb[0].mxu0
        %704 = vmatprep.mubr.bf16.mxu0 0
        %705 = vmatmul.mubr.bf16.gmra.mrb[0].mxu0 %v662
        %v706 = vpop.f32.mrb[0].mxu0
        %v707 = vadd.f32 %v631, %v706
        %v708 = vpop.f32.mrb[0].mxu0
        %v709 = vpop.f32.mrb[0].mxu0
        %v710 = vadd.f32 %v631, %v709
        %v711 = vpop.f32.mrb[0].mxu0
        %712 = vdwg.mxu0
        %v713 = vpack.c.bf16 %v702, %v699
        %v714 = vpack.c.bf16 %v710, %v707
        %v717 = vunpack.c.l.b16 %v713
        %v718 = vunpack.c.h.b16 %v713
        %v719 = vunpack.c.l.b16 %v714
        %v720 = vunpack.c.h.b16 %v714
        %v721 = vpack.c.b16 %v717, %v717
        %v722 = vpack.c.b16 %v718, %v718
        %v723 = vpack.c.b16 %v719, %v719
        %v724 = vpack.c.b16 %v720, %v720
        %729 = vst [vmem:[%s402] sm:$0xf] %v721
        %730 = vst [vmem:[%s402 + $0x4] sm:$0xf] %v722
        %731 = vst [vmem:[%s402 + $0x8] sm:$0xf] %v723
        %732 = vst [vmem:[%s402 + $0xc] sm:$0xf] %v724
        %s733 = sand.u32 %s210, 1
        %s734 = scalar_lea.sflag [#allocation5], %s733
        %s735 = sand.u32 %s210, 1
        %s736 = smul.addr %s735, 16
        %s737 = scalar_lea.vmem [#allocation4], %s736
        // Predicated region
        $region94: #{_joiner_fused_flat.1} parent=84 // pred_check
          %p738 = pneg %p220
        $region95: #{_joiner_fused_flat.1} parent=84 // pred_check_branch
          %740 = sbr.rel (%p738) target = $region97
        $region96: #{_joiner_fused_flat.1} parent=84 // pred_region
          %s741 = smul.u32 4, %s25
          %s743 = ssub.s32 256, 256
          %744 = vsyncadd %s734, %s743
          %s745 = smul.addr %s741, 2
          %s746 = sadd.s32 %s26, %s745
          %s747 = smul.addr %s746, 64
          %s748 = scalar_lea.hbm %s7, %s747
          %s749 = sshll.u32 %s737, 4
          %s750 = int_to_ptr.vmem [resolvable:$true] %s749
          %755 = dma.vmem_to_hbm [thread:$0]  %s750, 256, %s748, %s734, 64, 128, 4
        $region97: #{_joiner_fused_flat.1} parent=84 // pred_fallthru
          _
      $region85: #{_joiner_fused_flat.1} parent=5 // pred_fallthru
        _
      %p756 = scmp.le.s32.totalorder 2, %s16
      // Predicated region
      $region98: #{_joiner_fused_flat.1} parent=5 // pred_check
        %p757 = pneg %p756
      $region99: #{_joiner_fused_flat.1} parent=5 // pred_check_branch
        %759 = sbr.rel (%p757) target = $region101
      $region100: #{_joiner_fused_flat.1} parent=5 // pred_region
        %s760 = ssub.s32 %s16, 2
        // Predicated region
        $region102: #{_joiner_fused_flat.1} parent=100 // pred_check
          %p761 = pneg %p226
        $region103: #{_joiner_fused_flat.1} parent=100 // pred_check_branch
          %763 = sbr.rel (%p761) target = $region105
        $region104: #{_joiner_fused_flat.1} parent=100 // pred_region
          %s764 = sand.u32 %s211, 1
          %s765 = scalar_lea.sflag [#allocation5], %s764
          %s766 = sand.u32 %s211, 1
          %s767 = smul.addr %s766, 16
          %s768 = scalar_lea.vmem [#allocation4], %s767
          %769 = dma.done %s765, 256
        $region105: #{_joiner_fused_flat.1} parent=100 // pred_fallthru
          _
      $region101: #{_joiner_fused_flat.1} parent=5 // pred_fallthru
        _
    $region6: #{_joiner_fused_flat.1} parent=1 // loop_footer
      %s20 = sadd.s32 1, %s16
    $region7: #{_joiner_fused_flat.1} parent=1 // loop_footer_branch
      %15 = sbr.rel target = $region3
    $region8: #{_joiner_fused_flat.1} parent=1 // loop_exit
      _
    %770 = vsyncpa [#allocation5], 1
    %s771 = scalar_lea.sflag [#allocation5], 1
    %772 = vsyncpa %s771, 1

</llo_original>
